<compile_context>
chip_gen: v6e
topology: v6e:2x2x1
jax: 0.10.0
libtpu: 0.0.40
codegen_flags: <defaults>
</compile_context>

<pallas_src>
import functools

import jax
import jax.numpy as jnp
from jax.experimental import pallas as pl
from jax.experimental.pallas import tpu as pltpu

_LANE = 128


def _round_up(x, m):
    return ((x + m - 1) // m) * m


def _pad_cols(a, cols):
    pad = cols - a.shape[-1]
    return a if pad == 0 else jnp.pad(a, ((0, 0), (0, pad)))


def _pad_rows(a, rows):
    pad = rows - a.shape[0]
    return a if pad == 0 else jnp.pad(a, ((0, pad), (0, 0)))


def _encoder_kernel(x_ref, w0_ref, b0_ref, w1_ref, b1_ref, w2_ref, b2_ref,
                    o_ref):
    """Fused hot path: 3x (bf16 matmul -> f32 bias add -> ReLU) on one row-tile."""
    x = x_ref[...]                                               # bf16 [tm, F]

    h = jnp.dot(x, w0_ref[...], preferred_element_type=jnp.float32)
    h = jnp.maximum(h + b0_ref[...], 0.0)                        # f32 epilogue

    h = jnp.dot(h.astype(jnp.bfloat16), w1_ref[...],
                preferred_element_type=jnp.float32)
    h = jnp.maximum(h + b1_ref[...], 0.0)

    h = jnp.dot(h.astype(jnp.bfloat16), w2_ref[...],
                preferred_element_type=jnp.float32)
    h = jnp.maximum(h + b2_ref[...], 0.0)

    o_ref[...] = h.astype(o_ref.dtype)


@functools.partial(jax.jit, static_argnames=("tile_m",))
def particle_encoder_forward(inputs, params, tile_m=512):
    """inputs: [B, N, F] float32 -> [B, N, D] float32 (matches PyTorch module)."""
    w0, b0, w1, b1, w2, b2 = params
    B, N, F = inputs.shape
    H = w0.shape[1]
    D = w2.shape[1]
    M = B * N

    Hp = _round_up(H, _LANE)
    Dp = _round_up(D, _LANE)

    # Weight prep: zero-pad hidden/output dims to full 128-lane width and cast
    # matmul operands to bf16 (halves HBM traffic; accumulation stays f32).
    # Zero padding keeps semantics: padded columns are relu(0 + 0) = 0.
    w0p = _pad_cols(w0, Hp).astype(jnp.bfloat16)                  # [F,  Hp]
    b0p = _pad_cols(b0, Hp)                                       # [1,  Hp] f32
    w1p = _pad_cols(_pad_rows(w1, Hp), Hp).astype(jnp.bfloat16)   # [Hp, Hp]
    b1p = _pad_cols(b1, Hp)                                       # [1,  Hp] f32
    w2p = _pad_cols(_pad_rows(w2, Hp), Dp).astype(jnp.bfloat16)   # [Hp, Dp]
    b2p = _pad_cols(b2, Dp)                                       # [1,  Dp] f32

    x = inputs.reshape(M, F).astype(jnp.bfloat16)

    # Big row tile (bandwidth-bound); no full-array jnp.pad of x -- the ragged
    # last grid block is masked by Pallas and rows are independent.
    tm = min(tile_m, max(8, _round_up(M, 8)))
    grid = (pl.cdiv(M, tm),)

    # Explicit VMEM budget: 2x (double-buffered) x/out tiles + weight set
    # (double-buffered by the pipeliner) + f32 intermediates, with headroom.
    est = (2 * tm * F * 2                      # x tiles (bf16)
           + 2 * tm * Dp * 4                   # out tiles (f32)
           + 2 * (F * Hp + Hp * Hp + Hp * Dp) * 2 + 2 * 3 * Hp * 4  # weights
           + 3 * tm * Hp * 4)                  # materialized h activations
    vmem_limit = int(min(64 * 1024 * 1024, max(16 * 1024 * 1024, 2 * est)))

    out = pl.pallas_call(
        _encoder_kernel,
        out_shape=jax.ShapeDtypeStruct((M, Dp), jnp.float32),
        grid_spec=pltpu.PrefetchScalarGridSpec(
            num_scalar_prefetch=0,
            grid=grid,
            in_specs=[
                pl.BlockSpec((tm, F), lambda i: (i, 0)),    # x row-tile
                pl.BlockSpec((F, Hp), lambda i: (0, 0)),    # W0 (resident)
                pl.BlockSpec((1, Hp), lambda i: (0, 0)),    # b0
                pl.BlockSpec((Hp, Hp), lambda i: (0, 0)),   # W1
                pl.BlockSpec((1, Hp), lambda i: (0, 0)),    # b1
                pl.BlockSpec((Hp, Dp), lambda i: (0, 0)),   # W2
                pl.BlockSpec((1, Dp), lambda i: (0, 0)),    # b2
            ],
            out_specs=pl.BlockSpec((tm, Dp), lambda i: (i, 0)),
        ),
        compiler_params=pltpu.CompilerParams(
            dimension_semantics=("parallel",),      # row axis shards across TCs
            vmem_limit_bytes=vmem_limit),
    )(x, w0p, b0p, w1p, b1p, w2p, b2p)

    # Drop the zero-padded output lanes, restore [B, N, D].
    return out[:, :D].reshape(B, N, D)


def init_params(key, input_size, hidden_size, output_size):
    """Deterministic synthetic weights (shapes match nn.Linear layers, [in,out])."""
    k0, k1, k2, k3, k4, k5 = jax.random.split(key, 6)
    w0 = jax.random.normal(k0, (input_size, hidden_size), jnp.float32) * 0.1
    b0 = jax.random.normal(k1, (1, hidden_size), jnp.float32) * 0.1
    w1 = jax.random.normal(k2, (hidden_size, hidden_size), jnp.float32) * 0.1
    b1 = jax.random.normal(k3, (1, hidden_size), jnp.float32) * 0.1
    w2 = jax.random.normal(k4, (hidden_size, output_size), jnp.float32) * 0.1
    b2 = jax.random.normal(k5, (1, output_size), jnp.float32) * 0.1
    return (w0, b0, w1, b1, w2, b2)


def reference_forward_bf16(inputs, params):
    """Pure-JAX reference mirroring the kernel's dtype plan (tight check)."""
    w0, b0, w1, b1, w2, b2 = params
    B, N, F = inputs.shape
    x = inputs.reshape(B * N, F).astype(jnp.bfloat16)
    h = jnp.dot(x, w0.astype(jnp.bfloat16), preferred_element_type=jnp.float32)
    h = jnp.maximum(h + b0, 0.0)
    h = jnp.dot(h.astype(jnp.bfloat16), w1.astype(jnp.bfloat16),
                preferred_element_type=jnp.float32)
    h = jnp.maximum(h + b1, 0.0)
    h = jnp.dot(h.astype(jnp.bfloat16), w2.astype(jnp.bfloat16),
                preferred_element_type=jnp.float32)
    h = jnp.maximum(h + b2, 0.0)
    return h.reshape(B, N, w2.shape[1])


def reference_forward_f32(inputs, params):
    """Pure-JAX f32 reference mirroring the PyTorch forward (loose check)."""
    w0, b0, w1, b1, w2, b2 = params
    B, N, F = inputs.shape
    x = inputs.reshape(B * N, F)
    x = jax.nn.relu(x @ w0 + b0)
    x = jax.nn.relu(x @ w1 + b1)
    x = jax.nn.relu(x @ w2 + b2)
    return x.reshape(B, N, w2.shape[1])


if __name__ == "__main__":
    B, N = 2, 8                 # batch, num particles
    input_size = 16             # F
    hidden_size = 32
    output_size = 32            # D

    key = jax.random.PRNGKey(0)
    k_in, k_w = jax.random.split(key)

    inputs = jax.random.normal(k_in, (B, N, input_size), jnp.float32)
    params = init_params(k_w, input_size, hidden_size, output_size)

    out = particle_encoder_forward(inputs, params)
    out = jax.block_until_ready(out)

    assert out.shape == (B, N, output_size)

    ref_bf16 = reference_forward_bf16(inputs, params)
    ref_f32 = reference_forward_f32(inputs, params)
    assert jnp.allclose(out, ref_bf16, atol=1e-4, rtol=1e-4), \
        "mismatch vs bf16-plan reference"
    assert jnp.allclose(out, ref_f32, atol=3e-2, rtol=3e-2), \
        "mismatch vs f32 module semantics"

    print("KERNEL_OK")
</pallas_src>

<mosaic_0001>
module attributes {stable_mosaic.version = 11 : i64} {
  func.func @_encoder_kernel(%arg0: i32, %arg1: memref<16x16xbf16, #tpu.memory_space<vmem>>, %arg2: memref<16x128xbf16, #tpu.memory_space<vmem>>, %arg3: memref<1x128xf32, #tpu.memory_space<vmem>>, %arg4: memref<128x128xbf16, #tpu.memory_space<vmem>>, %arg5: memref<1x128xf32, #tpu.memory_space<vmem>>, %arg6: memref<128x128xbf16, #tpu.memory_space<vmem>>, %arg7: memref<1x128xf32, #tpu.memory_space<vmem>>, %arg8: memref<16x128xf32, #tpu.memory_space<vmem>>) attributes {dimension_semantics = [#tpu.dimension_semantics<parallel>], iteration_bounds = array<i64: 1>, scalar_prefetch = 0 : i64, scratch_operands = 0 : i64, tpu.core_type = #tpu.core_type<tc>, window_params = [{transform_indices = @transform_0, window_bounds = array<i64: 16, 16>}, {pipeline_mode = #tpu.pipeline_mode<synchronous>, transform_indices = @transform_1, window_bounds = array<i64: 16, 128>}, {pipeline_mode = #tpu.pipeline_mode<synchronous>, transform_indices = @transform_2, window_bounds = array<i64: 1, 128>}, {pipeline_mode = #tpu.pipeline_mode<synchronous>, transform_indices = @transform_3, window_bounds = array<i64: 128, 128>}, {pipeline_mode = #tpu.pipeline_mode<synchronous>, transform_indices = @transform_4, window_bounds = array<i64: 1, 128>}, {pipeline_mode = #tpu.pipeline_mode<synchronous>, transform_indices = @transform_5, window_bounds = array<i64: 128, 128>}, {pipeline_mode = #tpu.pipeline_mode<synchronous>, transform_indices = @transform_6, window_bounds = array<i64: 1, 128>}, {transform_indices = @transform_7, window_bounds = array<i64: 16, 128>}]} {
    %c0 = arith.constant 0 : index
    %c0_0 = arith.constant 0 : index
    %0 = vector.load %arg1[%c0, %c0_0] : memref<16x16xbf16, #tpu.memory_space<vmem>>, vector<16x16xbf16>
    %c0_1 = arith.constant 0 : index
    %c0_2 = arith.constant 0 : index
    %1 = vector.load %arg2[%c0_1, %c0_2] : memref<16x128xbf16, #tpu.memory_space<vmem>>, vector<16x128xbf16>
    %cst = arith.constant dense<0.000000e+00> : vector<16x128xf32>
    %2 = tpu.matmul %0, %1, %cst {dimension_numbers = #tpu.dot_dimension_numbers<[1], [0], [0], [1], [0, 0, 1, 1], [], []>} : vector<16x16xbf16>, vector<16x128xbf16>, vector<16x128xf32> -> vector<16x128xf32>
    %c0_3 = arith.constant 0 : index
    %c0_4 = arith.constant 0 : index
    %3 = vector.load %arg3[%c0_3, %c0_4] : memref<1x128xf32, #tpu.memory_space<vmem>>, vector<1x128xf32>
    %4 = vector.broadcast %3 : vector<1x128xf32> to vector<16x128xf32>
    %5 = arith.addf %2, %4 : vector<16x128xf32>
    %cst_5 = arith.constant 0.000000e+00 : f32
    %6 = vector.broadcast %cst_5 : f32 to vector<16x128xf32>
    %7 = arith.maximumf %5, %6 : vector<16x128xf32>
    %8 = arith.truncf %7 : vector<16x128xf32> to vector<16x128xbf16>
    %c0_6 = arith.constant 0 : index
    %c0_7 = arith.constant 0 : index
    %9 = vector.load %arg4[%c0_6, %c0_7] : memref<128x128xbf16, #tpu.memory_space<vmem>>, vector<128x128xbf16>
    %cst_8 = arith.constant dense<0.000000e+00> : vector<16x128xf32>
    %10 = tpu.matmul %8, %9, %cst_8 {dimension_numbers = #tpu.dot_dimension_numbers<[1], [0], [0], [1], [0, 0, 1, 1], [], []>} : vector<16x128xbf16>, vector<128x128xbf16>, vector<16x128xf32> -> vector<16x128xf32>
    %c0_9 = arith.constant 0 : index
    %c0_10 = arith.constant 0 : index
    %11 = vector.load %arg5[%c0_9, %c0_10] : memref<1x128xf32, #tpu.memory_space<vmem>>, vector<1x128xf32>
    %12 = vector.broadcast %11 : vector<1x128xf32> to vector<16x128xf32>
    %13 = arith.addf %10, %12 : vector<16x128xf32>
    %cst_11 = arith.constant 0.000000e+00 : f32
    %14 = vector.broadcast %cst_11 : f32 to vector<16x128xf32>
    %15 = arith.maximumf %13, %14 : vector<16x128xf32>
    %16 = arith.truncf %15 : vector<16x128xf32> to vector<16x128xbf16>
    %c0_12 = arith.constant 0 : index
    %c0_13 = arith.constant 0 : index
    %17 = vector.load %arg6[%c0_12, %c0_13] : memref<128x128xbf16, #tpu.memory_space<vmem>>, vector<128x128xbf16>
    %cst_14 = arith.constant dense<0.000000e+00> : vector<16x128xf32>
    %18 = tpu.matmul %16, %17, %cst_14 {dimension_numbers = #tpu.dot_dimension_numbers<[1], [0], [0], [1], [0, 0, 1, 1], [], []>} : vector<16x128xbf16>, vector<128x128xbf16>, vector<16x128xf32> -> vector<16x128xf32>
    %c0_15 = arith.constant 0 : index
    %c0_16 = arith.constant 0 : index
    %19 = vector.load %arg7[%c0_15, %c0_16] : memref<1x128xf32, #tpu.memory_space<vmem>>, vector<1x128xf32>
    %20 = vector.broadcast %19 : vector<1x128xf32> to vector<16x128xf32>
    %21 = arith.addf %18, %20 : vector<16x128xf32>
    %cst_17 = arith.constant 0.000000e+00 : f32
    %22 = vector.broadcast %cst_17 : f32 to vector<16x128xf32>
    %23 = arith.maximumf %21, %22 : vector<16x128xf32>
    %c0_18 = arith.constant 0 : index
    %c0_19 = arith.constant 0 : index
    %24 = vector.load %arg8[%c0_18, %c0_19] : memref<16x128xf32, #tpu.memory_space<vmem>>, vector<16x128xf32>
    tpu.vector_store %arg8[%c0_18, %c0_19], %23 {strides = array<i32>} : memref<16x128xf32, #tpu.memory_space<vmem>>, vector<16x128xf32>,
    return
  }
  func.func @transform_0(%arg0: i32) -> (i32, i32) {
    %c0_i32 = arith.constant 0 : i32
    %c0_i32_0 = arith.constant 0 : i32
    return %arg0, %c0_i32 : i32, i32
  }
  func.func @transform_1(%arg0: i32) -> (i32, i32) {
    %c0_i32 = arith.constant 0 : i32
    %c0_i32_0 = arith.constant 0 : i32
    %c0_i32_1 = arith.constant 0 : i32
    return %c0_i32, %c0_i32_0 : i32, i32
  }
  func.func @transform_2(%arg0: i32) -> (i32, i32) {
    %c0_i32 = arith.constant 0 : i32
    %c0_i32_0 = arith.constant 0 : i32
    %c0_i32_1 = arith.constant 0 : i32
    return %c0_i32, %c0_i32_0 : i32, i32
  }
  func.func @transform_3(%arg0: i32) -> (i32, i32) {
    %c0_i32 = arith.constant 0 : i32
    %c0_i32_0 = arith.constant 0 : i32
    %c0_i32_1 = arith.constant 0 : i32
    return %c0_i32, %c0_i32_0 : i32, i32
  }
  func.func @transform_4(%arg0: i32) -> (i32, i32) {
    %c0_i32 = arith.constant 0 : i32
    %c0_i32_0 = arith.constant 0 : i32
    %c0_i32_1 = arith.constant 0 : i32
    return %c0_i32, %c0_i32_0 : i32, i32
  }
  func.func @transform_5(%arg0: i32) -> (i32, i32) {
    %c0_i32 = arith.constant 0 : i32
    %c0_i32_0 = arith.constant 0 : i32
    %c0_i32_1 = arith.constant 0 : i32
    return %c0_i32, %c0_i32_0 : i32, i32
  }
  func.func @transform_6(%arg0: i32) -> (i32, i32) {
    %c0_i32 = arith.constant 0 : i32
    %c0_i32_0 = arith.constant 0 : i32
    %c0_i32_1 = arith.constant 0 : i32
    return %c0_i32, %c0_i32_0 : i32, i32
  }
  func.func @transform_7(%arg0: i32) -> (i32, i32) {
    %c0_i32 = arith.constant 0 : i32
    %c0_i32_0 = arith.constant 0 : i32
    return %arg0, %c0_i32 : i32, i32
  }
}

</mosaic_0001>

<llo_original>
// kernel: particle_encoder_forward.1
$region0: #{particle_encoder_forward.1}
  #allocation0 [shape = 'u32[]', space=smem, size = 0x4, offset = 0x4, fixed_abs, tag = 'smem constant byte address 0x4 - core index']
  #allocation1 [shape = 'u32[144,128]{1,0:T(1,128)}', space=vmem, size = 0x12000, scoped, tag = 'internal scratch']
  %s0 = inlined_call_operand.vmem [shape: bf16[16,16], index: 0, kind: input, shape index: {}]
  %s1 = inlined_call_operand.vmem [shape: bf16[16,128], index: 1, kind: input, shape index: {}]
  %s2 = inlined_call_operand.vmem [shape: f32[1,128], index: 2, kind: input, shape index: {}]
  %s3 = inlined_call_operand.vmem [shape: bf16[128,128], index: 3, kind: input, shape index: {}]
  %s4 = inlined_call_operand.vmem [shape: f32[1,128], index: 4, kind: input, shape index: {}]
  %s5 = inlined_call_operand.vmem [shape: bf16[128,128], index: 5, kind: input, shape index: {}]
  %s6 = inlined_call_operand.vmem [shape: f32[1,128], index: 6, kind: input, shape index: {}]
  %s7 = inlined_call_operand.vmem [shape: f32[16,128], index: 7, kind: output, shape index: {}]
  %s8 = sld [smem:[#allocation0]]
  $region38: #{particle_encoder_forward.1} parent=0
    _
  %s10 = ssub.s32 1, %s8
  %s11 = scalar_select 0, %s10, %s8
  // Predicated region
  $region2: #{particle_encoder_forward.1} parent=0 // pred_check
    _
  $region3: #{particle_encoder_forward.1} parent=0 // pred_check_branch
    %13 = sbr.rel (0) target = $region5
  $region4: #{particle_encoder_forward.1} parent=0 // pred_region
    _
  $region5: #{particle_encoder_forward.1} parent=0 // pred_fallthru
    _
  // Predicated region
  $region6: #{particle_encoder_forward.1} parent=0 // pred_check
    _
  $region7: #{particle_encoder_forward.1} parent=0 // pred_check_branch
    %15 = sbr.rel (0) target = $region9
  $region8: #{particle_encoder_forward.1} parent=0 // pred_region
    _
  $region9: #{particle_encoder_forward.1} parent=0 // pred_fallthru
    _
  // Predicated region
  $region10: #{particle_encoder_forward.1} parent=0 // pred_check
    _
  $region11: #{particle_encoder_forward.1} parent=0 // pred_check_branch
    %17 = sbr.rel (0) target = $region13
  $region12: #{particle_encoder_forward.1} parent=0 // pred_region
    _
  $region13: #{particle_encoder_forward.1} parent=0 // pred_fallthru
    _
  // Predicated region
  $region14: #{particle_encoder_forward.1} parent=0 // pred_check
    _
  $region15: #{particle_encoder_forward.1} parent=0 // pred_check_branch
    %19 = sbr.rel (0) target = $region17
  $region16: #{particle_encoder_forward.1} parent=0 // pred_region
    _
  $region17: #{particle_encoder_forward.1} parent=0 // pred_fallthru
    _
  // Predicated region
  $region18: #{particle_encoder_forward.1} parent=0 // pred_check
    _
  $region19: #{particle_encoder_forward.1} parent=0 // pred_check_branch
    %21 = sbr.rel (0) target = $region21
  $region20: #{particle_encoder_forward.1} parent=0 // pred_region
    _
  $region21: #{particle_encoder_forward.1} parent=0 // pred_fallthru
    _
  // Predicated region
  $region22: #{particle_encoder_forward.1} parent=0 // pred_check
    _
  $region23: #{particle_encoder_forward.1} parent=0 // pred_check_branch
    %23 = sbr.rel (0) target = $region25
  $region24: #{particle_encoder_forward.1} parent=0 // pred_region
    _
  $region25: #{particle_encoder_forward.1} parent=0 // pred_fallthru
    _
  // Predicated region
  $region26: #{particle_encoder_forward.1} parent=0 // pred_check
    _
  $region27: #{particle_encoder_forward.1} parent=0 // pred_check_branch
    %25 = sbr.rel (0) target = $region29
  $region28: #{particle_encoder_forward.1} parent=0 // pred_region
    _
  $region29: #{particle_encoder_forward.1} parent=0 // pred_fallthru
    _
  %v27 = vld [vmem:[%s0] sm:$0xf]
  %v28 = vld [vmem:[%s0 + $0x4] sm:$0xf]
  %v29 = vld [vmem:[%s1] sm:$0xf]
  %v30 = vld [vmem:[%s1 + $0x4] sm:$0xf]
  %v31 = vld [vmem:[%s2] sm:$0x1]
  %v33 = vlaneseq
  %v34 = vshrl.u32 %v33, 7
  %v35 = vsub.s32 0, %v34
  %v36 = vrot.slane %v31, %v35
  %v40 = vunpack.c.l.b16 %v27
  %v41 = vunpack.c.l.b16 %v28
  %v42 = vpack.c.b16 %v41, %v40
  %v45 = vunpack.c.l.b16 %v29
  %v46 = vunpack.c.l.b16 %v30
  %v47 = vpack.c.b16 %v46, %v45
  %vm49 = vcmask 130048
  %v51 = vsel %vm49, %v42, 0
  %53 = vmatprep.subr.bf16.mxu0 0
  %54 = vmatpush1.bf16.msra.mxu0 0
  %55 = vmatprep.subr.bf16.mxu0 0
  %56 = vmatpush1.bf16.msra.mxu0 0
  %57 = vmatprep.subr.bf16.mxu0 0
  %58 = vmatpush1.bf16.msra.mxu0 0
  %59 = vmatprep.subr.bf16.mxu0 0
  %60 = vmatpush1.bf16.msra.mxu0 0
  %61 = vmatprep.subr.bf16.mxu0 0
  %62 = vmatpush1.bf16.msra.mxu0 0
  %63 = vmatprep.subr.bf16.mxu0 0
  %64 = vmatpush1.bf16.msra.mxu0 0
  %65 = vmatprep.subr.bf16.mxu0 0
  %66 = vmatpush1.bf16.msra.mxu0 0
  %67 = vmatprep.subr.bf16.mxu0 0
  %68 = vmatpush1.bf16.msra.mxu0 %v47
  %69 = vmatprep.subr.bf16.mxu0 0
  %70 = vmatpush2.bf16.msra.mxu0 0
  %71 = vmatprep.subr.bf16.mxu0 0
  %72 = vmatpush2.bf16.msra.mxu0 0
  %73 = vmatprep.subr.bf16.mxu0 0
  %74 = vmatpush2.bf16.msra.mxu0 0
  %75 = vmatprep.subr.bf16.mxu0 0
  %76 = vmatpush2.bf16.msra.mxu0 0
  %77 = vmatprep.subr.bf16.mxu0 0
  %78 = vmatpush2.bf16.msra.mxu0 0
  %79 = vmatprep.subr.bf16.mxu0 0
  %80 = vmatpush2.bf16.msra.mxu0 0
  %81 = vmatprep.subr.bf16.mxu0 0
  %82 = vmatpush2.bf16.msra.mxu0 0
  %83 = vmatprep.subr.bf16.mxu0 0
  %84 = vmatpush2.bf16.msra.mxu0 0
  %85 = vmatprep.mubr.bf16.mxu0 0
  %86 = vmatmul.mubr.bf16.gmra.mxu0 %v51
  %v87 = vpop.f32.mrf.mxu0
  %v88 = vadd.f32 %v36, %v87
  %v89 = vpop.f32.mrf.mxu0
  %v90 = vpop.f32.mrf.mxu0
  %v91 = vadd.f32 %v36, %v90
  %v92 = vpop.f32.mrf.mxu0
  %93 = vdwg.mxu0
  %v94 = vmax.f32 %v88, 0.0
  %v95 = vmax.f32 %v91, 0.0
  %v96 = vpack.c.bf16 %v95, %v94
  %v97 = vld [vmem:[%s3] sm:$0xf]
  %v98 = vld [vmem:[%s3 + $0x4] sm:$0xf]
  %v99 = vld [vmem:[%s3 + $0x8] sm:$0xf]
  %v100 = vld [vmem:[%s3 + $0xc] sm:$0xf]
  %v101 = vld [vmem:[%s3 + $0x10] sm:$0xf]
  %v102 = vld [vmem:[%s3 + $0x14] sm:$0xf]
  %v103 = vld [vmem:[%s3 + $0x18] sm:$0xf]
  %v104 = vld [vmem:[%s3 + $0x1c] sm:$0xf]
  %v105 = vld [vmem:[%s3 + $0x20] sm:$0xf]
  %v106 = vld [vmem:[%s3 + $0x24] sm:$0xf]
  %v107 = vld [vmem:[%s3 + $0x28] sm:$0xf]
  %v108 = vld [vmem:[%s3 + $0x2c] sm:$0xf]
  %v109 = vld [vmem:[%s3 + $0x30] sm:$0xf]
  %v110 = vld [vmem:[%s3 + $0x34] sm:$0xf]
  %v111 = vld [vmem:[%s3 + $0x38] sm:$0xf]
  %v112 = vld [vmem:[%s3 + $0x3c] sm:$0xf]
  %v113 = vld [vmem:[%s4] sm:$0x1]
  %v115 = vlaneseq
  %v116 = vshrl.u32 %v115, 7
  %v117 = vsub.s32 0, %v116
  %v118 = vrot.slane %v113, %v117
  %v136 = vunpack.c.l.b16 %v97
  %v137 = vunpack.c.l.b16 %v98
  %v138 = vunpack.c.l.b16 %v99
  %v139 = vunpack.c.l.b16 %v100
  %v140 = vunpack.c.l.b16 %v101
  %v141 = vunpack.c.l.b16 %v102
  %v142 = vunpack.c.l.b16 %v103
  %v143 = vunpack.c.l.b16 %v104
  %v144 = vunpack.c.l.b16 %v105
  %v145 = vunpack.c.l.b16 %v106
  %v146 = vunpack.c.l.b16 %v107
  %v147 = vunpack.c.l.b16 %v108
  %v148 = vunpack.c.l.b16 %v109
  %v149 = vunpack.c.l.b16 %v110
  %v150 = vunpack.c.l.b16 %v111
  %v151 = vunpack.c.l.b16 %v112
  %v152 = vpack.c.b16 %v137, %v136
  %v153 = vpack.c.b16 %v139, %v138
  %v154 = vpack.c.b16 %v141, %v140
  %v155 = vpack.c.b16 %v143, %v142
  %v156 = vpack.c.b16 %v145, %v144
  %v157 = vpack.c.b16 %v147, %v146
  %v158 = vpack.c.b16 %v149, %v148
  %v159 = vpack.c.b16 %v151, %v150
  %168 = vmatprep.subr.bf16.mxu0 0
  %169 = vmatpush1.bf16.msra.mxu0 %v159
  %170 = vmatprep.subr.bf16.mxu0 0
  %171 = vmatpush1.bf16.msra.mxu0 %v158
  %172 = vmatprep.subr.bf16.mxu0 0
  %173 = vmatpush1.bf16.msra.mxu0 %v157
  %174 = vmatprep.subr.bf16.mxu0 0
  %175 = vmatpush1.bf16.msra.mxu0 %v156
  %176 = vmatprep.subr.bf16.mxu0 0
  %177 = vmatpush1.bf16.msra.mxu0 %v155
  %178 = vmatprep.subr.bf16.mxu0 0
  %179 = vmatpush1.bf16.msra.mxu0 %v154
  %180 = vmatprep.subr.bf16.mxu0 0
  %181 = vmatpush1.bf16.msra.mxu0 %v153
  %182 = vmatprep.subr.bf16.mxu0 0
  %183 = vmatpush1.bf16.msra.mxu0 %v152
  %184 = vmatprep.subr.bf16.mxu0 0
  %185 = vmatpush2.bf16.msra.mxu0 0
  %186 = vmatprep.subr.bf16.mxu0 0
  %187 = vmatpush2.bf16.msra.mxu0 0
  %188 = vmatprep.subr.bf16.mxu0 0
  %189 = vmatpush2.bf16.msra.mxu0 0
  %190 = vmatprep.subr.bf16.mxu0 0
  %191 = vmatpush2.bf16.msra.mxu0 0
  %192 = vmatprep.subr.bf16.mxu0 0
  %193 = vmatpush2.bf16.msra.mxu0 0
  %194 = vmatprep.subr.bf16.mxu0 0
  %195 = vmatpush2.bf16.msra.mxu0 0
  %196 = vmatprep.subr.bf16.mxu0 0
  %197 = vmatpush2.bf16.msra.mxu0 0
  %198 = vmatprep.subr.bf16.mxu0 0
  %199 = vmatpush2.bf16.msra.mxu0 0
  %200 = vmatprep.mubr.bf16.mxu0 0
  %201 = vmatmul.mubr.bf16.gmra.mxu0 %v96
  %v202 = vpop.f32.mrf.mxu0
  %v203 = vadd.f32 %v118, %v202
  %v204 = vpop.f32.mrf.mxu0
  %v205 = vpop.f32.mrf.mxu0
  %v206 = vadd.f32 %v118, %v205
  %v207 = vpop.f32.mrf.mxu0
  %208 = vdwg.mxu0
  %v209 = vmax.f32 %v203, 0.0
  %v210 = vmax.f32 %v206, 0.0
  %v211 = vpack.c.bf16 %v210, %v209
  %v212 = vld [vmem:[%s5] sm:$0xf]
  %v213 = vld [vmem:[%s5 + $0x4] sm:$0xf]
  %v214 = vld [vmem:[%s5 + $0x8] sm:$0xf]
  %v215 = vld [vmem:[%s5 + $0xc] sm:$0xf]
  %v216 = vld [vmem:[%s5 + $0x10] sm:$0xf]
  %v217 = vld [vmem:[%s5 + $0x14] sm:$0xf]
  %v218 = vld [vmem:[%s5 + $0x18] sm:$0xf]
  %v219 = vld [vmem:[%s5 + $0x1c] sm:$0xf]
  %v220 = vld [vmem:[%s5 + $0x20] sm:$0xf]
  %v221 = vld [vmem:[%s5 + $0x24] sm:$0xf]
  %v222 = vld [vmem:[%s5 + $0x28] sm:$0xf]
  %v223 = vld [vmem:[%s5 + $0x2c] sm:$0xf]
  %v224 = vld [vmem:[%s5 + $0x30] sm:$0xf]
  %v225 = vld [vmem:[%s5 + $0x34] sm:$0xf]
  %v226 = vld [vmem:[%s5 + $0x38] sm:$0xf]
  %v227 = vld [vmem:[%s5 + $0x3c] sm:$0xf]
  %v228 = vld [vmem:[%s6] sm:$0x1]
  %v230 = vlaneseq
  %v231 = vshrl.u32 %v230, 7
  %v232 = vsub.s32 0, %v231
  %v233 = vrot.slane %v228, %v232
  %v251 = vunpack.c.l.b16 %v212
  %v252 = vunpack.c.l.b16 %v213
  %v253 = vunpack.c.l.b16 %v214
  %v254 = vunpack.c.l.b16 %v215
  %v255 = vunpack.c.l.b16 %v216
  %v256 = vunpack.c.l.b16 %v217
  %v257 = vunpack.c.l.b16 %v218
  %v258 = vunpack.c.l.b16 %v219
  %v259 = vunpack.c.l.b16 %v220
  %v260 = vunpack.c.l.b16 %v221
  %v261 = vunpack.c.l.b16 %v222
  %v262 = vunpack.c.l.b16 %v223
  %v263 = vunpack.c.l.b16 %v224
  %v264 = vunpack.c.l.b16 %v225
  %v265 = vunpack.c.l.b16 %v226
  %v266 = vunpack.c.l.b16 %v227
  %v267 = vpack.c.b16 %v252, %v251
  %v268 = vpack.c.b16 %v254, %v253
  %v269 = vpack.c.b16 %v256, %v255
  %v270 = vpack.c.b16 %v258, %v257
  %v271 = vpack.c.b16 %v260, %v259
  %v272 = vpack.c.b16 %v262, %v261
  %v273 = vpack.c.b16 %v264, %v263
  %v274 = vpack.c.b16 %v266, %v265
  %283 = vmatprep.subr.bf16.mxu0 0
  %284 = vmatpush1.bf16.msra.mxu0 %v274
  %285 = vmatprep.subr.bf16.mxu0 0
  %286 = vmatpush1.bf16.msra.mxu0 %v273
  %287 = vmatprep.subr.bf16.mxu0 0
  %288 = vmatpush1.bf16.msra.mxu0 %v272
  %289 = vmatprep.subr.bf16.mxu0 0
  %290 = vmatpush1.bf16.msra.mxu0 %v271
  %291 = vmatprep.subr.bf16.mxu0 0
  %292 = vmatpush1.bf16.msra.mxu0 %v270
  %293 = vmatprep.subr.bf16.mxu0 0
  %294 = vmatpush1.bf16.msra.mxu0 %v269
  %295 = vmatprep.subr.bf16.mxu0 0
  %296 = vmatpush1.bf16.msra.mxu0 %v268
  %297 = vmatprep.subr.bf16.mxu0 0
  %298 = vmatpush1.bf16.msra.mxu0 %v267
  %299 = vmatprep.subr.bf16.mxu0 0
  %300 = vmatpush2.bf16.msra.mxu0 0
  %301 = vmatprep.subr.bf16.mxu0 0
  %302 = vmatpush2.bf16.msra.mxu0 0
  %303 = vmatprep.subr.bf16.mxu0 0
  %304 = vmatpush2.bf16.msra.mxu0 0
  %305 = vmatprep.subr.bf16.mxu0 0
  %306 = vmatpush2.bf16.msra.mxu0 0
  %307 = vmatprep.subr.bf16.mxu0 0
  %308 = vmatpush2.bf16.msra.mxu0 0
  %309 = vmatprep.subr.bf16.mxu0 0
  %310 = vmatpush2.bf16.msra.mxu0 0
  %311 = vmatprep.subr.bf16.mxu0 0
  %312 = vmatpush2.bf16.msra.mxu0 0
  %313 = vmatprep.subr.bf16.mxu0 0
  %314 = vmatpush2.bf16.msra.mxu0 0
  %315 = vmatprep.mubr.bf16.mxu0 0
  %316 = vmatmul.mubr.bf16.gmra.mxu0 %v211
  %v317 = vpop.f32.mrf.mxu0
  %v318 = vadd.f32 %v233, %v317
  %v319 = vpop.f32.mrf.mxu0
  %v320 = vpop.f32.mrf.mxu0
  %v321 = vadd.f32 %v233, %v320
  %v322 = vpop.f32.mrf.mxu0
  %323 = vdwg.mxu0
  %v324 = vmax.f32 %v318, 0.0
  %v325 = vmax.f32 %v321, 0.0
  %326 = vst [vmem:[%s7] sm:$0xff] %v324
  %327 = vst [vmem:[%s7 + $0x8] sm:$0xff] %v325
  // Predicated region
  $region30: #{particle_encoder_forward.1} parent=0 // pred_check
    _
  $region31: #{particle_encoder_forward.1} parent=0 // pred_check_branch
    %329 = sbr.rel (0) target = $region33
  $region32: #{particle_encoder_forward.1} parent=0 // pred_region
    _
  $region33: #{particle_encoder_forward.1} parent=0 // pred_fallthru
    _
  // Predicated region
  $region34: #{particle_encoder_forward.1} parent=0 // pred_check
    _
  $region35: #{particle_encoder_forward.1} parent=0 // pred_check_branch
    %331 = sbr.rel (0) target = $region37
  $region36: #{particle_encoder_forward.1} parent=0 // pred_region
    _
  $region37: #{particle_encoder_forward.1} parent=0 // pred_fallthru
    _

</llo_original>
